<compile_context>
chip_gen: v7x
topology: tpu7x:2x2x1
jax: 0.10.0
libtpu: 0.0.40
codegen_flags: <defaults>
</compile_context>

<pallas_src>
import functools

import numpy as np
import jax
import jax.numpy as jnp
from jax import lax
from jax.experimental import pallas as pl
from jax.experimental.pallas import tpu as pltpu


# -----------------------------------------------------------------------------
# Host-side constant: the 11x11 Gaussian 'same'-padding filter as a kron band
# matrix (the 2-D window is separable -> kron(A_h, A_w)).  Vectorized numpy +
# lru_cache so it is built once per (H, W) and baked into the jitted program.
# -----------------------------------------------------------------------------
def _gaussian_1d(window_size: int, sigma: float) -> np.ndarray:
    x = np.arange(window_size, dtype=np.float64) - window_size // 2
    g = np.exp(-(x ** 2) / (2.0 * sigma ** 2))
    return g / g.sum()


def _band_filter_matrix(size: int, window_size: int, sigma: float) -> np.ndarray:
    """A[i, j] = g[j - i + p]  (conv with 'same' zero padding along one axis)."""
    g = _gaussian_1d(window_size, sigma)
    p = window_size // 2
    idx = np.arange(size)
    d = idx[None, :] - idx[:, None] + p
    valid = (d >= 0) & (d < window_size)
    A = np.where(valid, g[np.clip(d, 0, window_size - 1)], 0.0)
    return A.astype(np.float32)


@functools.lru_cache(maxsize=None)
def _gaussian_kron_T(H: int, W: int, window_size: int = 11, sigma: float = 1.5) -> np.ndarray:
    """Kt such that (x_flat @ Kt)[n, i*W+j] == Gaussian-filtered x[n, i, j]."""
    A_h = _band_filter_matrix(H, window_size, sigma)
    A_w = _band_filter_matrix(W, window_size, sigma)
    K = np.kron(A_h, A_w)                      # (H*W, H*W)
    return np.ascontiguousarray(K.T.astype(np.float32))


# -----------------------------------------------------------------------------
# Pallas kernel: ONE fused MXU matmul for all 5 filtered maps, SSIM map,
# L2 feature distance, final scalar.
# -----------------------------------------------------------------------------
def _adv_loss_kernel(kt_ref, xs_ref, tki_ref, tkt_ref, out_ref,
                     *, nc: int, m_pad: int, lamb: float, budget: float):
    HW = xs_ref.shape[-1]

    # Single fused matmul: the 5 Gaussian-filtered quantities are stacked along
    # rows so the (HW, HW) weight goes through the MXU exactly once (M = 5*m_pad).
    Y = jnp.dot(xs_ref[...], kt_ref[...], preferred_element_type=jnp.float32)

    mu1 = Y[0 * m_pad:1 * m_pad]
    mu2 = Y[1 * m_pad:2 * m_pad]
    s11 = Y[2 * m_pad:3 * m_pad]
    s22 = Y[3 * m_pad:4 * m_pad]
    s12 = Y[4 * m_pad:5 * m_pad]

    mu1_sq = mu1 * mu1
    mu2_sq = mu2 * mu2
    mu12 = mu1 * mu2
    sigma1 = s11 - mu1_sq
    sigma2 = s22 - mu2_sq
    sigma12 = s12 - mu12

    C1 = 0.01 ** 2
    C2 = 0.03 ** 2
    num = (2.0 * mu12 + C1) * (2.0 * sigma12 + C2)
    den = (mu1_sq + mu2_sq + C1) * (sigma1 + sigma2 + C2)
    # EUP reciprocal keeps the per-element divide off the VALU slot.
    ssim_map = num * pl.reciprocal(den, approx=True)

    if m_pad != nc:
        # Mask the zero-padded rows out of the mean (they'd contribute SSIM=1).
        row = lax.broadcasted_iota(jnp.int32, ssim_map.shape, 0)
        ssim_map = jnp.where(row < nc, ssim_map, 0.0)

    ssim = jnp.sum(ssim_map) / float(nc * HW)
    dssim = (1.0 - ssim) * 0.5                          # DSSIM(img, source)

    # term_internal = torch.dist(tk_img, tk_target)  (L2 norm of difference)
    d = tki_ref[...] - tkt_ref[...]
    term_internal = jnp.sqrt(jnp.sum(d * d))

    tp = dssim - budget
    term_perturb = jnp.where(tp > 0.0, tp * tp, 0.0)

    out_ref[0, 0] = term_internal + lamb * term_perturb


@functools.partial(jax.jit, static_argnames=("lamb", "budget", "matmul_dtype"))
def adversarial_loss(img, source, tk_img, tk_target, *,
                     lamb=1.0, budget=0.3, matmul_dtype=jnp.float32):
    N, C, H, W = img.shape
    HW = H * W
    NC = N * C

    if HW > 2048:
        # TODO(synk): switch to a separable two-pass (A_h then A_w) Gaussian
        # filter for large images; the dense kron matrix is (HW)^2 and will not
        # fit VMEM (64x64 -> 64 MiB = all of v7x VMEM).
        raise NotImplementedError("dense-kron SSIM path only supports H*W <= 2048")

    x1 = img.reshape(NC, HW).astype(jnp.float32)
    x2 = source.reshape(NC, HW).astype(jnp.float32)

    # Products computed in f32 (before any optional bf16 downcast for the MXU).
    blocks = [x1, x2, x1 * x1, x2 * x2, x1 * x2]

    # Pad each block's row count to a multiple of 8 (sublane) so every block
    # slice inside the kernel is sublane-aligned and loads/stores are full-vreg.
    m_pad = ((NC + 7) // 8) * 8
    if m_pad != NC:
        blocks = [jnp.pad(b, ((0, m_pad - NC), (0, 0))) for b in blocks]
    xs = jnp.concatenate(blocks, axis=0).astype(matmul_dtype)     # (5*m_pad, HW)

    # Gaussian kron filter: cached numpy constant, baked into the jitted program.
    kt = jnp.asarray(_gaussian_kron_T(H, W)).astype(matmul_dtype)  # (HW, HW)

    tki = tk_img.reshape(1, -1).astype(jnp.float32)
    tkt = tk_target.reshape(1, -1).astype(jnp.float32)

    # Size the scoped VMEM limit from the actual footprint (matters on v7x: 64 MiB).
    itemsize = jnp.dtype(matmul_dtype).itemsize
    est = (HW * HW * itemsize                 # Kt
           + 2 * 5 * m_pad * HW * itemsize    # stacked LHS I/O buffers
           + 12 * m_pad * HW * 4              # f32 matmul result + elementwise temps
           + 4 * tki.size * 4
           + (1 << 20))
    vmem_limit = int(min(max(2 * est, 16 << 20), 48 << 20))

    out = pl.pallas_call(
        functools.partial(_adv_loss_kernel, nc=NC, m_pad=m_pad,
                          lamb=float(lamb), budget=float(budget)),
        out_shape=jax.ShapeDtypeStruct((1, 1), jnp.float32),
        in_specs=[
            pl.BlockSpec(memory_space=pltpu.MemorySpace.VMEM),  # Gaussian kron filter
            pl.BlockSpec(memory_space=pltpu.MemorySpace.VMEM),  # stacked img/source planes
            pl.BlockSpec(memory_space=pltpu.MemorySpace.VMEM),  # tk_img features
            pl.BlockSpec(memory_space=pltpu.MemorySpace.VMEM),  # tk_target features
        ],
        out_specs=pl.BlockSpec(memory_space=pltpu.MemorySpace.SMEM),
        compiler_params=pltpu.CompilerParams(vmem_limit_bytes=vmem_limit),
    )(kt, xs, tki, tkt)
    return out[0, 0]


if __name__ == "__main__":
    key = jax.random.PRNGKey(0)
    k1, k2, k3, k4 = jax.random.split(key, 4)

    # img / source: NCHW images in [0, 1] (SSIM constants assume this range)
    img = jax.random.uniform(k1, (2, 4, 16, 16), dtype=jnp.float32)
    source = jax.random.uniform(k2, (2, 4, 16, 16), dtype=jnp.float32)
    # tk_img / tk_target: internal model features (batch=2, seq=8, hidden=32)
    tk_img = jax.random.normal(k3, (2, 8, 32), dtype=jnp.float32)
    tk_target = jax.random.normal(k4, (2, 8, 32), dtype=jnp.float32)

    # Default matmul_dtype=f32 matches the PyTorch reference numerics; pass
    # matmul_dtype=jnp.bfloat16 on v6e/v7x for native-MXU throughput.
    res = adversarial_loss(img, source, tk_img, tk_target, lamb=1.0, budget=0.3)
    jax.block_until_ready(res)
    print("KERNEL_OK")
</pallas_src>

<mosaic_0001>
module attributes {stable_mosaic.version = 11 : i64} {
  func.func @_adv_loss_kernel(%arg0: memref<256x256xf32, #tpu.memory_space<vmem>>, %arg1: memref<40x256xf32, #tpu.memory_space<vmem>>, %arg2: memref<1x512xf32, #tpu.memory_space<vmem>>, %arg3: memref<1x512xf32, #tpu.memory_space<vmem>>, %arg4: memref<1x1xf32, #tpu.memory_space<smem>>) attributes {dimension_semantics = [], scalar_prefetch = 0 : i64, scratch_operands = 0 : i64, tpu.core_type = #tpu.core_type<tc>} {
    %c0 = arith.constant 0 : index
    %c0_0 = arith.constant 0 : index
    %0 = vector.load %arg1[%c0, %c0_0] : memref<40x256xf32, #tpu.memory_space<vmem>>, vector<40x256xf32>
    %c0_1 = arith.constant 0 : index
    %c0_2 = arith.constant 0 : index
    %1 = vector.load %arg0[%c0_1, %c0_2] : memref<256x256xf32, #tpu.memory_space<vmem>>, vector<256x256xf32>
    %cst = arith.constant dense<0.000000e+00> : vector<40x256xf32>
    %2 = tpu.matmul %0, %1, %cst {dimension_numbers = #tpu.dot_dimension_numbers<[1], [0], [0], [1], [0, 0, 1, 1], [], []>} : vector<40x256xf32>, vector<256x256xf32>, vector<40x256xf32> -> vector<40x256xf32>
    %3 = vector.extract_strided_slice %2 {offsets = [0, 0], sizes = [8, 256], strides = [1, 1]} : vector<40x256xf32> to vector<8x256xf32>
    %4 = vector.extract_strided_slice %2 {offsets = [8, 0], sizes = [8, 256], strides = [1, 1]} : vector<40x256xf32> to vector<8x256xf32>
    %5 = vector.extract_strided_slice %2 {offsets = [16, 0], sizes = [8, 256], strides = [1, 1]} : vector<40x256xf32> to vector<8x256xf32>
    %6 = vector.extract_strided_slice %2 {offsets = [24, 0], sizes = [8, 256], strides = [1, 1]} : vector<40x256xf32> to vector<8x256xf32>
    %7 = vector.extract_strided_slice %2 {offsets = [32, 0], sizes = [8, 256], strides = [1, 1]} : vector<40x256xf32> to vector<8x256xf32>
    %8 = arith.mulf %3, %3 : vector<8x256xf32>
    %9 = arith.mulf %4, %4 : vector<8x256xf32>
    %10 = arith.mulf %3, %4 : vector<8x256xf32>
    %11 = arith.subf %5, %8 : vector<8x256xf32>
    %12 = arith.subf %6, %9 : vector<8x256xf32>
    %13 = arith.subf %7, %10 : vector<8x256xf32>
    %cst_3 = arith.constant 2.000000e+00 : f32
    %14 = vector.broadcast %cst_3 : f32 to vector<8x256xf32>
    %15 = arith.mulf %14, %10 : vector<8x256xf32>
    %cst_4 = arith.constant 9.99999974E-5 : f32
    %16 = vector.broadcast %cst_4 : f32 to vector<8x256xf32>
    %17 = arith.addf %15, %16 : vector<8x256xf32>
    %cst_5 = arith.constant 2.000000e+00 : f32
    %18 = vector.broadcast %cst_5 : f32 to vector<8x256xf32>
    %19 = arith.mulf %18, %13 : vector<8x256xf32>
    %cst_6 = arith.constant 8.99999984E-4 : f32
    %20 = vector.broadcast %cst_6 : f32 to vector<8x256xf32>
    %21 = arith.addf %19, %20 : vector<8x256xf32>
    %22 = arith.mulf %17, %21 : vector<8x256xf32>
    %23 = arith.addf %8, %9 : vector<8x256xf32>
    %cst_7 = arith.constant 9.99999974E-5 : f32
    %24 = vector.broadcast %cst_7 : f32 to vector<8x256xf32>
    %25 = arith.addf %23, %24 : vector<8x256xf32>
    %26 = arith.addf %11, %12 : vector<8x256xf32>
    %cst_8 = arith.constant 8.99999984E-4 : f32
    %27 = vector.broadcast %cst_8 : f32 to vector<8x256xf32>
    %28 = arith.addf %26, %27 : vector<8x256xf32>
    %29 = arith.mulf %25, %28 : vector<8x256xf32>
    %30 = tpu.reciprocal %29 {approx = true} : vector<8x256xf32> -> vector<8x256xf32>
    %31 = arith.mulf %22, %30 : vector<8x256xf32>
    %32 = vector.shape_cast %31 : vector<8x256xf32> to vector<1x8x256xf32>
    %cst_9 = arith.constant dense<0.000000e+00> : vector<1xf32>
    %33 = vector.multi_reduction <add>, %32, %cst_9 [1, 2] : vector<1x8x256xf32> to vector<1xf32>
    %34 = vector.shape_cast %33 : vector<1xf32> to vector<1x1x1xf32>
    %35 = vector.extract %34[0, 0, 0] : f32 from vector<1x1x1xf32>
    %cst_10 = arith.constant 2.048000e+03 : f32
    %36 = arith.divf %35, %cst_10 : f32
    %cst_11 = arith.constant 1.000000e+00 : f32
    %37 = arith.subf %cst_11, %36 : f32
    %cst_12 = arith.constant 5.000000e-01 : f32
    %38 = arith.mulf %37, %cst_12 : f32
    %c0_13 = arith.constant 0 : index
    %c0_14 = arith.constant 0 : index
    %39 = vector.load %arg2[%c0_13, %c0_14] : memref<1x512xf32, #tpu.memory_space<vmem>>, vector<1x512xf32>
    %c0_15 = arith.constant 0 : index
    %c0_16 = arith.constant 0 : index
    %40 = vector.load %arg3[%c0_15, %c0_16] : memref<1x512xf32, #tpu.memory_space<vmem>>, vector<1x512xf32>
    %41 = arith.subf %39, %40 : vector<1x512xf32>
    %42 = arith.mulf %41, %41 : vector<1x512xf32>
    %43 = vector.shape_cast %42 : vector<1x512xf32> to vector<1x1x512xf32>
    %cst_17 = arith.constant dense<0.000000e+00> : vector<1xf32>
    %44 = vector.multi_reduction <add>, %43, %cst_17 [1, 2] : vector<1x1x512xf32> to vector<1xf32>
    %45 = vector.shape_cast %44 : vector<1xf32> to vector<1x1x1xf32>
    %46 = vector.extract %45[0, 0, 0] : f32 from vector<1x1x1xf32>
    %47 = math.sqrt %46 : f32
    %cst_18 = arith.constant 3.000000e-01 : f32
    %48 = arith.subf %38, %cst_18 : f32
    %cst_19 = arith.constant 0.000000e+00 : f32
    %49 = arith.cmpf ogt, %48, %cst_19 : f32
    %50 = arith.mulf %48, %48 : f32
    %cst_20 = arith.constant 0.000000e+00 : f32
    %51 = arith.select %49, %50, %cst_20 : f32
    %cst_21 = arith.constant 1.000000e+00 : f32
    %52 = arith.mulf %cst_21, %51 : f32
    %53 = arith.addf %47, %52 : f32
    %c0_22 = arith.constant 0 : index
    %c0_23 = arith.constant 0 : index
    %54 = memref.load %arg4[%c0_22, %c0_23] : memref<1x1xf32, #tpu.memory_space<smem>>
    memref.store %53, %arg4[%c0_22, %c0_23] : memref<1x1xf32, #tpu.memory_space<smem>>
    return
  }
}

</mosaic_0001>

<llo_original>
// kernel: adversarial_loss.1
$region0: #{adversarial_loss.1}
  #allocation0 [shape = 'u32[]', space=smem, size = 0x4, offset = 0x4, fixed_abs, tag = 'smem constant byte address 0x4 - core index']
  #allocation1 [shape = 'u32[144,128]{1,0:T(1,128)}', space=vmem, size = 0x12000, scoped, tag = 'internal scratch']
  %s0 = inlined_call_operand.vmem [shape: f32[256,256], index: 0, kind: input, shape index: {}]
  %s1 = inlined_call_operand.vmem [shape: f32[40,256], index: 1, kind: input, shape index: {}]
  %s2 = inlined_call_operand.vmem [shape: f32[1,512], index: 2, kind: input, shape index: {}]
  %s3 = inlined_call_operand.vmem [shape: f32[1,512], index: 3, kind: input, shape index: {}]
  %s4 = inlined_call_operand.hbm [shape: f32[1,1], index: 4, kind: output, shape index: {}]
  %s5 = sld [smem:[#allocation0]]
  $region26: #{adversarial_loss.1} parent=0
    _
  %s7 = ssub.s32 1, %s5
  %s8 = scalar_select 0, %s7, %s5
  $region1: #{adversarial_loss.1} parent=0
    #allocation2 [shape = 'u8[512]{0}', space=smem, size = 0x200, scoped, tag = 'output window, operand 0, single buffered']
    #allocation3 [shape = 's32[1]{0}', space=sflag, size = 0x4, scoped, tag = 'scoped memory for adversarial_loss.1']
    %9 = vsyncpa [#allocation3], 0
    // Predicated region
    $region2: #{adversarial_loss.1} parent=1 // pred_check
      _
    $region3: #{adversarial_loss.1} parent=1 // pred_check_branch
      %11 = sbr.rel (0) target = $region5
    $region4: #{adversarial_loss.1} parent=1 // pred_region
      _
    $region5: #{adversarial_loss.1} parent=1 // pred_fallthru
      _
    // Predicated region
    $region6: #{adversarial_loss.1} parent=1 // pred_check
      _
    $region7: #{adversarial_loss.1} parent=1 // pred_check_branch
      %13 = sbr.rel (0) target = $region9
    $region8: #{adversarial_loss.1} parent=1 // pred_region
      _
    $region9: #{adversarial_loss.1} parent=1 // pred_fallthru
      _
    // Predicated region
    $region10: #{adversarial_loss.1} parent=1 // pred_check
      _
    $region11: #{adversarial_loss.1} parent=1 // pred_check_branch
      %15 = sbr.rel (0) target = $region13
    $region12: #{adversarial_loss.1} parent=1 // pred_region
      _
    $region13: #{adversarial_loss.1} parent=1 // pred_fallthru
      _
    // Predicated region
    $region14: #{adversarial_loss.1} parent=1 // pred_check
      _
    $region15: #{adversarial_loss.1} parent=1 // pred_check_branch
      %17 = sbr.rel (0) target = $region17
    $region16: #{adversarial_loss.1} parent=1 // pred_region
      _
    $region17: #{adversarial_loss.1} parent=1 // pred_fallthru
      _
    %v18 = vld [vmem:[%s1] sm:$0xff]
    %v19 = vld [vmem:[%s1 + $0x8] sm:$0xff]
    %v20 = vld [vmem:[%s1 + $0x10] sm:$0xff]
    %v21 = vld [vmem:[%s1 + $0x18] sm:$0xff]
    %v22 = vld [vmem:[%s1 + $0x20] sm:$0xff]
    %v23 = vld [vmem:[%s1 + $0x28] sm:$0xff]
    %v24 = vld [vmem:[%s1 + $0x30] sm:$0xff]
    %v25 = vld [vmem:[%s1 + $0x38] sm:$0xff]
    %v26 = vld [vmem:[%s1 + $0x40] sm:$0xff]
    %v27 = vld [vmem:[%s1 + $0x48] sm:$0xff]
    %v28 = vld [vmem:[%s0] sm:$0xff]
    %v29 = vld [vmem:[%s0 + $0x8] sm:$0xff]
    %v30 = vld [vmem:[%s0 + $0x10] sm:$0xff]
    %v31 = vld [vmem:[%s0 + $0x18] sm:$0xff]
    %v32 = vld [vmem:[%s0 + $0x20] sm:$0xff]
    %v33 = vld [vmem:[%s0 + $0x28] sm:$0xff]
    %v34 = vld [vmem:[%s0 + $0x30] sm:$0xff]
    %v35 = vld [vmem:[%s0 + $0x38] sm:$0xff]
    %v36 = vld [vmem:[%s0 + $0x40] sm:$0xff]
    %v37 = vld [vmem:[%s0 + $0x48] sm:$0xff]
    %v38 = vld [vmem:[%s0 + $0x50] sm:$0xff]
    %v39 = vld [vmem:[%s0 + $0x58] sm:$0xff]
    %v40 = vld [vmem:[%s0 + $0x60] sm:$0xff]
    %v41 = vld [vmem:[%s0 + $0x68] sm:$0xff]
    %v42 = vld [vmem:[%s0 + $0x70] sm:$0xff]
    %v43 = vld [vmem:[%s0 + $0x78] sm:$0xff]
    %v44 = vld [vmem:[%s0 + $0x80] sm:$0xff]
    %v45 = vld [vmem:[%s0 + $0x88] sm:$0xff]
    %v46 = vld [vmem:[%s0 + $0x90] sm:$0xff]
    %v47 = vld [vmem:[%s0 + $0x98] sm:$0xff]
    %v48 = vld [vmem:[%s0 + $0xa0] sm:$0xff]
    %v49 = vld [vmem:[%s0 + $0xa8] sm:$0xff]
    %v50 = vld [vmem:[%s0 + $0xb0] sm:$0xff]
    %v51 = vld [vmem:[%s0 + $0xb8] sm:$0xff]
    %v52 = vld [vmem:[%s0 + $0xc0] sm:$0xff]
    %v53 = vld [vmem:[%s0 + $0xc8] sm:$0xff]
    %v54 = vld [vmem:[%s0 + $0xd0] sm:$0xff]
    %v55 = vld [vmem:[%s0 + $0xd8] sm:$0xff]
    %v56 = vld [vmem:[%s0 + $0xe0] sm:$0xff]
    %v57 = vld [vmem:[%s0 + $0xe8] sm:$0xff]
    %v58 = vld [vmem:[%s0 + $0xf0] sm:$0xff]
    %v59 = vld [vmem:[%s0 + $0xf8] sm:$0xff]
    %v60 = vld [vmem:[%s0 + $0x100] sm:$0xff]
    %v61 = vld [vmem:[%s0 + $0x108] sm:$0xff]
    %v62 = vld [vmem:[%s0 + $0x110] sm:$0xff]
    %v63 = vld [vmem:[%s0 + $0x118] sm:$0xff]
    %v64 = vld [vmem:[%s0 + $0x120] sm:$0xff]
    %v65 = vld [vmem:[%s0 + $0x128] sm:$0xff]
    %v66 = vld [vmem:[%s0 + $0x130] sm:$0xff]
    %v67 = vld [vmem:[%s0 + $0x138] sm:$0xff]
    %v68 = vld [vmem:[%s0 + $0x140] sm:$0xff]
    %v69 = vld [vmem:[%s0 + $0x148] sm:$0xff]
    %v70 = vld [vmem:[%s0 + $0x150] sm:$0xff]
    %v71 = vld [vmem:[%s0 + $0x158] sm:$0xff]
    %v72 = vld [vmem:[%s0 + $0x160] sm:$0xff]
    %v73 = vld [vmem:[%s0 + $0x168] sm:$0xff]
    %v74 = vld [vmem:[%s0 + $0x170] sm:$0xff]
    %v75 = vld [vmem:[%s0 + $0x178] sm:$0xff]
    %v76 = vld [vmem:[%s0 + $0x180] sm:$0xff]
    %v77 = vld [vmem:[%s0 + $0x188] sm:$0xff]
    %v78 = vld [vmem:[%s0 + $0x190] sm:$0xff]
    %v79 = vld [vmem:[%s0 + $0x198] sm:$0xff]
    %v80 = vld [vmem:[%s0 + $0x1a0] sm:$0xff]
    %v81 = vld [vmem:[%s0 + $0x1a8] sm:$0xff]
    %v82 = vld [vmem:[%s0 + $0x1b0] sm:$0xff]
    %v83 = vld [vmem:[%s0 + $0x1b8] sm:$0xff]
    %v84 = vld [vmem:[%s0 + $0x1c0] sm:$0xff]
    %v85 = vld [vmem:[%s0 + $0x1c8] sm:$0xff]
    %v86 = vld [vmem:[%s0 + $0x1d0] sm:$0xff]
    %v87 = vld [vmem:[%s0 + $0x1d8] sm:$0xff]
    %v88 = vld [vmem:[%s0 + $0x1e0] sm:$0xff]
    %v89 = vld [vmem:[%s0 + $0x1e8] sm:$0xff]
    %v90 = vld [vmem:[%s0 + $0x1f0] sm:$0xff]
    %v91 = vld [vmem:[%s0 + $0x1f8] sm:$0xff]
    %92 = vmatprep.subr.mxu0 %v29
    %93 = vmatpush1.msra.mxu0 %v28
    %94 = vmatprep.subr.mxu0 %v31
    %95 = vmatpush1.msra.mxu0 %v30
    %96 = vmatprep.subr.mxu0 %v33
    %97 = vmatpush1.msra.mxu0 %v32
    %98 = vmatprep.subr.mxu0 %v35
    %99 = vmatpush1.msra.mxu0 %v34
    %100 = vmatprep.subr.mxu0 %v37
    %101 = vmatpush1.msra.mxu0 %v36
    %102 = vmatprep.subr.mxu0 %v39
    %103 = vmatpush1.msra.mxu0 %v38
    %104 = vmatprep.subr.mxu0 %v41
    %105 = vmatpush1.msra.mxu0 %v40
    %106 = vmatprep.subr.mxu0 %v43
    %107 = vmatpush1.msra.mxu0 %v42
    %108 = vmatprep.subr.mxu0 %v45
    %109 = vmatpush1.msra.mxu0 %v44
    %110 = vmatprep.subr.mxu0 %v47
    %111 = vmatpush1.msra.mxu0 %v46
    %112 = vmatprep.subr.mxu0 %v49
    %113 = vmatpush1.msra.mxu0 %v48
    %114 = vmatprep.subr.mxu0 %v51
    %115 = vmatpush1.msra.mxu0 %v50
    %116 = vmatprep.subr.mxu0 %v53
    %117 = vmatpush1.msra.mxu0 %v52
    %118 = vmatprep.subr.mxu0 %v55
    %119 = vmatpush1.msra.mxu0 %v54
    %120 = vmatprep.subr.mxu0 %v57
    %121 = vmatpush1.msra.mxu0 %v56
    %122 = vmatprep.subr.mxu0 %v59
    %123 = vmatpush1.msra.mxu0 %v58
    %124 = vmatprep.subr.mxu0 %v61
    %125 = vmatpush1.msra.mxu0 %v60
    %126 = vmatprep.subr.mxu0 %v63
    %127 = vmatpush1.msra.mxu0 %v62
    %128 = vmatprep.subr.mxu0 %v65
    %129 = vmatpush1.msra.mxu0 %v64
    %130 = vmatprep.subr.mxu0 %v67
    %131 = vmatpush1.msra.mxu0 %v66
    %132 = vmatprep.subr.mxu0 %v69
    %133 = vmatpush1.msra.mxu0 %v68
    %134 = vmatprep.subr.mxu0 %v71
    %135 = vmatpush1.msra.mxu0 %v70
    %136 = vmatprep.subr.mxu0 %v73
    %137 = vmatpush1.msra.mxu0 %v72
    %138 = vmatprep.subr.mxu0 %v75
    %139 = vmatpush1.msra.mxu0 %v74
    %140 = vmatprep.subr.mxu0 %v77
    %141 = vmatpush1.msra.mxu0 %v76
    %142 = vmatprep.subr.mxu0 %v79
    %143 = vmatpush1.msra.mxu0 %v78
    %144 = vmatprep.subr.mxu0 %v81
    %145 = vmatpush1.msra.mxu0 %v80
    %146 = vmatprep.subr.mxu0 %v83
    %147 = vmatpush1.msra.mxu0 %v82
    %148 = vmatprep.subr.mxu0 %v85
    %149 = vmatpush1.msra.mxu0 %v84
    %150 = vmatprep.subr.mxu0 %v87
    %151 = vmatpush1.msra.mxu0 %v86
    %152 = vmatprep.subr.mxu0 %v89
    %153 = vmatpush1.msra.mxu0 %v88
    %154 = vmatprep.subr.mxu0 %v91
    %155 = vmatpush1.msra.mxu0 %v90
    %156 = vmatprep.mubr.f32.mxu0 %v19
    %157 = vmatmul.mubr.f32.gmra.mrb[0].mxu0 %v18
    %v158 = vpop.f32.mrb[0].mxu0
    %v159 = vadd.f32 0.0, %v158
    %v160 = vpop.f32.mrb[0].mxu0
    %v161 = vadd.f32 0.0, %v160
    %162 = vmatprep.mubr.f32.mxu0 %v21
    %163 = vmatmul.mubr.f32.gmra.mrb[0].mxu0 %v20
    %v164 = vpop.f32.mrb[0].mxu0
    %v165 = vadd.f32 0.0, %v164
    %v166 = vpop.f32.mrb[0].mxu0
    %v167 = vadd.f32 0.0, %v166
    %168 = vmatprep.mubr.f32.mxu0 %v23
    %169 = vmatmul.mubr.f32.gmra.mrb[0].mxu0 %v22
    %v170 = vpop.f32.mrb[0].mxu0
    %v171 = vadd.f32 0.0, %v170
    %v172 = vpop.f32.mrb[0].mxu0
    %v173 = vadd.f32 0.0, %v172
    %174 = vmatprep.mubr.f32.mxu0 %v25
    %175 = vmatmul.mubr.f32.gmra.mrb[0].mxu0 %v24
    %v176 = vpop.f32.mrb[0].mxu0
    %v177 = vadd.f32 0.0, %v176
    %v178 = vpop.f32.mrb[0].mxu0
    %v179 = vadd.f32 0.0, %v178
    %180 = vmatprep.mubr.f32.mxu0 %v27
    %181 = vmatmul.mubr.f32.gmra.mrb[0].mxu0 %v26
    %v182 = vpop.f32.mrb[0].mxu0
    %v183 = vadd.f32 0.0, %v182
    %v184 = vpop.f32.mrb[0].mxu0
    %v185 = vadd.f32 0.0, %v184
    %186 = vdwg.mxu0
    %v187 = vmul.f32 %v159, %v159
    %v188 = vmul.f32 %v161, %v161
    %v189 = vmul.f32 %v165, %v165
    %v190 = vmul.f32 %v167, %v167
    %v191 = vmul.f32 %v159, %v165
    %v192 = vmul.f32 %v161, %v167
    %v193 = vsub.f32 %v171, %v187
    %v194 = vsub.f32 %v173, %v188
    %v195 = vsub.f32 %v177, %v189
    %v196 = vsub.f32 %v179, %v190
    %v197 = vsub.f32 %v183, %v191
    %v198 = vsub.f32 %v185, %v192
    %v199 = vmul.f32 %v191, 2.0
    %v200 = vmul.f32 %v192, 2.0
    %v201 = vadd.f32 %v199, 0.0001
    %v202 = vadd.f32 %v200, 0.0001
    %v203 = vmul.f32 %v197, 2.0
    %v204 = vmul.f32 %v198, 2.0
    %v205 = vadd.f32 %v203, 0.0009
    %v206 = vadd.f32 %v204, 0.0009
    %v207 = vmul.f32 %v201, %v205
    %v208 = vmul.f32 %v202, %v206
    %v209 = vadd.f32 %v187, %v189
    %v210 = vadd.f32 %v188, %v190
    %v211 = vadd.f32 %v209, 0.0001
    %v212 = vadd.f32 %v210, 0.0001
    %v213 = vadd.f32 %v193, %v195
    %v214 = vadd.f32 %v194, %v196
    %v215 = vadd.f32 %v213, 0.0009
    %v216 = vadd.f32 %v214, 0.0009
    %v217 = vmul.f32 %v211, %v215
    %v218 = vmul.f32 %v212, %v216
    %v219 = vrcp.pop %v217
    %v220 = vrcp.pop %v218
    %v221 = vmul.f32 %v207, %v219
    %v222 = vmul.f32 %v208, %v220
    %v223 = vadd.f32 %v221, %v222
    %224 = vadd.xlane.f32.xlu0 %v223
    %v225 = vpop.xlane.xlu0 %224
    %v226 = vrot.slane %v225, 4
    %v227 = vadd.f32 %v225, %v226
    %v228 = vrot.slane %v227, 2
    %v229 = vadd.f32 %v227, %v228
    %v230 = vrot.slane %v229, 1
    %v231 = vadd.f32 %v229, %v230
    %s232 = vtos %v231
    %v233 = vrcp.pop 2048.0
    %s234 = vtos %v233
    %s235 = smul.f32 %s232, %s234
    %s236 = ssub.f32 1.0, %s235
    %s237 = smul.f32 %s236, 0.5
    %v238 = vld [vmem:[%s2] sm:$0xf]
    %v239 = vld [vmem:[%s3] sm:$0xf]
    %v240 = vsub.f32 %v238, %v239
    %v241 = vmul.f32 %v240, %v240
    %v243 = vlaneseq
    %v244 = vshrl.u32 %v243, 7
    %v245 = vsub.s32 0, %v244
    %v246 = vrot.slane %v241, %v245
    %v247 = vlaneseq
    %v248 = vshrl.u32 %v247, 7
    %v249 = vsub.s32 1, %v248
    %v250 = vrot.slane %v241, %v249
    %v251 = vlaneseq
    %v252 = vshrl.u32 %v251, 7
    %v253 = vsub.s32 2, %v252
    %v254 = vrot.slane %v241, %v253
    %v255 = vlaneseq
    %v256 = vshrl.u32 %v255, 7
    %v257 = vsub.s32 3, %v256
    %v258 = vrot.slane %v241, %v257
    %vm263 = vcmask 1040384
    %v264 = vsel %vm263, %v246, 0.0
    %v265 = vsel %vm263, %v250, 0.0
    %v266 = vadd.f32 %v264, %v265
    %v267 = vsel %vm263, %v254, 0.0
    %v268 = vadd.f32 %v266, %v267
    %v269 = vsel %vm263, %v258, 0.0
    %v270 = vadd.f32 %v268, %v269
    %271 = vadd.xlane.f32.xlu0 %v270
    %v272 = vpop.xlane.xlu0 %271
    %v273 = vrot.slane %v272, 4
    %v274 = vadd.f32 %v272, %v273
    %v275 = vrot.slane %v274, 2
    %v276 = vadd.f32 %v274, %v275
    %v277 = vrot.slane %v276, 1
    %v278 = vadd.f32 %v276, %v277
    %s279 = vtos %v278
    %v280 = vstv %s279
    %v281 = vrsqrt.pop %v280
    %v282 = vmul.f32 %v280, %v281
    %vm283 = vcmp.eq.f32.partialorder %v280, inf
    %v284 = vsel %vm283, %v280, %v282
    %vm285 = vcmp.eq.f32.partialorder %v280, 0.0
    %v286 = vand.u32 %v280, 2147483648
    %v287 = vsel %vm285, %v286, %v284
    %s288 = vtos %v287
    %s289 = ssub.f32 %s237, 0.3
    %p290 = scmp.gt.f32.partialorder %s289, 0.0
    %s291 = smul.f32 %s289, %s289
    %s292 = scalar_select %p290, %s291, 0.0
    %s293 = sadd.f32 %s288, %s292
    %s294 = scalar_lea.smem [#allocation2], 0
    %295 = sst [smem:[%s294]] %s293
    // Predicated region
    $region18: #{adversarial_loss.1} parent=1 // pred_check
      _
    $region19: #{adversarial_loss.1} parent=1 // pred_check_branch
      %297 = sbr.rel (0) target = $region21
    $region20: #{adversarial_loss.1} parent=1 // pred_region
      %s299 = ssub.s32 16, 16
      %300 = vsyncadd [#allocation3], %s299
      %303 = dma.smem_to_hbm [#allocation2], 16, %s4, [#allocation3]
    $region21: #{adversarial_loss.1} parent=1 // pred_fallthru
      _
    // Predicated region
    $region22: #{adversarial_loss.1} parent=1 // pred_check
      _
    $region23: #{adversarial_loss.1} parent=1 // pred_check_branch
      %305 = sbr.rel (0) target = $region25
    $region24: #{adversarial_loss.1} parent=1 // pred_region
      %306 = dma.done [#allocation3], 16
    $region25: #{adversarial_loss.1} parent=1 // pred_fallthru
      _
    %307 = sfence
    %308 = vsyncpa [#allocation3], 1

</llo_original>
